<compile_context>
chip_gen: v7x
topology: tpu7x:2x2x1
jax: 0.10.0
libtpu: 0.0.40
codegen_flags: <defaults>
</compile_context>

<pallas_src>
import jax
import jax.numpy as jnp
from jax.experimental import pallas as pl
from jax.experimental.pallas import tpu as pltpu


def conv1x1_permute_kernel(x_ref, w_ref, b_ref, o_ref):
    # x_ref: (C_in, H, W)  in VMEM
    # w_ref: (C_out * C_in,) in SMEM   (row-major flattened Conv2d 1x1 weight)
    # b_ref: (C_out,)        in SMEM
    # o_ref: (C_out, W, H)  in VMEM
    c_in = x_ref.shape[0]
    c_out = o_ref.shape[0]

    # Load each input channel once; all channels fit in a handful of vregs.
    x_ch = [x_ref[ci] for ci in range(c_in)]          # each (H, W), f32

    for co in range(c_out):
        # y = sum_ci w[co, ci] * x[ci] + b[co]  — pure VPU scalar*vector FMAs.
        acc = w_ref[co * c_in + 0] * x_ch[0]
        for ci in range(1, c_in):
            acc = acc + w_ref[co * c_in + ci] * x_ch[ci]
        acc = acc + b_ref[co]
        # permute(0, 2, 1): per-channel (H, W) -> (W, H) transpose on the XLU.
        o_ref[co] = acc.T.astype(o_ref.dtype)


def conv1x1_permute(x, weight, bias):
    """x: (C_in, H, W) f32, weight: (C_out, C_in) f32, bias: (C_out,) f32
       returns (C_out, W, H) f32 == permute(0, 2, 1) of the 1x1-conv output."""
    c_in, h, w = x.shape
    c_out = weight.shape[0]
    w_flat = weight.reshape(c_out * c_in)             # scalars for SMEM

    return pl.pallas_call(
        conv1x1_permute_kernel,
        out_shape=jax.ShapeDtypeStruct((c_out, w, h), x.dtype),
        in_specs=[
            pl.BlockSpec(memory_space=pltpu.MemorySpace.VMEM),   # x: whole array
            pl.BlockSpec(memory_space=pltpu.MemorySpace.SMEM),   # weight scalars
            pl.BlockSpec(memory_space=pltpu.MemorySpace.SMEM),   # bias scalars
        ],
        out_specs=pl.BlockSpec(memory_space=pltpu.MemorySpace.VMEM),
    )(x, w_flat, bias)
    # TODO(synk): if this op is called per-sample/per-layer, batch many (C_in,H,W)
    # inputs into one pallas_call (batch as a leading "parallel" grid axis) so the
    # output becomes lane-dense and the fixed launch/DMA overhead is amortized.


def reference(x, weight, bias):
    # pure-JAX reference for correctness check
    y = jnp.einsum("oc,chw->ohw", weight, x) + bias[:, None, None]
    return jnp.transpose(y, (0, 2, 1))


if __name__ == "__main__":
    key = jax.random.PRNGKey(0)
    kx, kw, kb = jax.random.split(key, 3)

    C_IN, C_OUT, H, W = 2, 2, 8, 8

    x1 = jax.random.normal(kx, (C_IN, H, W), dtype=jnp.float32)
    # Deterministic Conv2d(2, 2, 1) parameters (kernel_size=1 -> weight is (C_out, C_in))
    bound = 1.0 / (C_IN ** 0.5)
    weight = jax.random.uniform(kw, (C_OUT, C_IN), dtype=jnp.float32,
                                minval=-bound, maxval=bound)
    bias = jax.random.uniform(kb, (C_OUT,), dtype=jnp.float32,
                              minval=-bound, maxval=bound)

    out = conv1x1_permute(x1, weight, bias)
    out = jax.block_until_ready(out)

    ref = reference(x1, weight, bias)
    assert out.shape == (C_OUT, W, H), out.shape
    assert jnp.allclose(out, ref, atol=1e-5, rtol=1e-5)

    print("KERNEL_OK")
</pallas_src>

<mosaic_0001>
module attributes {stable_mosaic.version = 11 : i64} {
  func.func @conv1x1_permute_kernel(%arg0: memref<2x8x8xf32, #tpu.memory_space<vmem>>, %arg1: memref<4xf32, #tpu.memory_space<smem>>, %arg2: memref<2xf32, #tpu.memory_space<smem>>, %arg3: memref<2x8x8xf32, #tpu.memory_space<vmem>>) attributes {dimension_semantics = [], scalar_prefetch = 0 : i64, scratch_operands = 0 : i64, tpu.core_type = #tpu.core_type<tc>} {
    %c0 = arith.constant 0 : index
    %c0_0 = arith.constant 0 : index
    %c0_1 = arith.constant 0 : index
    %0 = vector.load %arg0[%c0, %c0_0, %c0_1] : memref<2x8x8xf32, #tpu.memory_space<vmem>>, vector<1x8x8xf32>
    %1 = vector.shape_cast %0 : vector<1x8x8xf32> to vector<8x8xf32>
    %c1 = arith.constant 1 : index
    %c0_2 = arith.constant 0 : index
    %c0_3 = arith.constant 0 : index
    %2 = vector.load %arg0[%c1, %c0_2, %c0_3] : memref<2x8x8xf32, #tpu.memory_space<vmem>>, vector<1x8x8xf32>
    %3 = vector.shape_cast %2 : vector<1x8x8xf32> to vector<8x8xf32>
    %c0_4 = arith.constant 0 : index
    %4 = memref.load %arg1[%c0_4] : memref<4xf32, #tpu.memory_space<smem>>
    %5 = vector.broadcast %4 : f32 to vector<8x8xf32>
    %6 = arith.mulf %5, %1 : vector<8x8xf32>
    %c1_5 = arith.constant 1 : index
    %7 = memref.load %arg1[%c1_5] : memref<4xf32, #tpu.memory_space<smem>>
    %8 = vector.broadcast %7 : f32 to vector<8x8xf32>
    %9 = arith.mulf %8, %3 : vector<8x8xf32>
    %10 = arith.addf %6, %9 : vector<8x8xf32>
    %c0_6 = arith.constant 0 : index
    %11 = memref.load %arg2[%c0_6] : memref<2xf32, #tpu.memory_space<smem>>
    %12 = vector.broadcast %11 : f32 to vector<8x8xf32>
    %13 = arith.addf %10, %12 : vector<8x8xf32>
    %14 = tpu.transpose %13, [1, 0] : vector<8x8xf32> -> vector<8x8xf32>
    %c0_7 = arith.constant 0 : index
    %c0_8 = arith.constant 0 : index
    %c0_9 = arith.constant 0 : index
    %15 = vector.load %arg3[%c0_7, %c0_8, %c0_9] : memref<2x8x8xf32, #tpu.memory_space<vmem>>, vector<1x8x8xf32>
    %16 = vector.shape_cast %15 : vector<1x8x8xf32> to vector<8x8xf32>
    %17 = vector.shape_cast %14 : vector<8x8xf32> to vector<1x8x8xf32>
    tpu.vector_store %arg3[%c0_7, %c0_8, %c0_9], %17 {strides = array<i32>} : memref<2x8x8xf32, #tpu.memory_space<vmem>>, vector<1x8x8xf32>,
    %c2 = arith.constant 2 : index
    %18 = memref.load %arg1[%c2] : memref<4xf32, #tpu.memory_space<smem>>
    %19 = vector.broadcast %18 : f32 to vector<8x8xf32>
    %20 = arith.mulf %19, %1 : vector<8x8xf32>
    %c3 = arith.constant 3 : index
    %21 = memref.load %arg1[%c3] : memref<4xf32, #tpu.memory_space<smem>>
    %22 = vector.broadcast %21 : f32 to vector<8x8xf32>
    %23 = arith.mulf %22, %3 : vector<8x8xf32>
    %24 = arith.addf %20, %23 : vector<8x8xf32>
    %c1_10 = arith.constant 1 : index
    %25 = memref.load %arg2[%c1_10] : memref<2xf32, #tpu.memory_space<smem>>
    %26 = vector.broadcast %25 : f32 to vector<8x8xf32>
    %27 = arith.addf %24, %26 : vector<8x8xf32>
    %28 = tpu.transpose %27, [1, 0] : vector<8x8xf32> -> vector<8x8xf32>
    %c1_11 = arith.constant 1 : index
    %c0_12 = arith.constant 0 : index
    %c0_13 = arith.constant 0 : index
    %29 = vector.load %arg3[%c1_11, %c0_12, %c0_13] : memref<2x8x8xf32, #tpu.memory_space<vmem>>, vector<1x8x8xf32>
    %30 = vector.shape_cast %29 : vector<1x8x8xf32> to vector<8x8xf32>
    %31 = vector.shape_cast %28 : vector<8x8xf32> to vector<1x8x8xf32>
    tpu.vector_store %arg3[%c1_11, %c0_12, %c0_13], %31 {strides = array<i32>} : memref<2x8x8xf32, #tpu.memory_space<vmem>>, vector<1x8x8xf32>,
    return
  }
}

</mosaic_0001>

<llo_original>
// kernel: tpu_custom_call.1
$region0: #{tpu_custom_call.1}
  #allocation0 [shape = 'u32[]', space=smem, size = 0x4, offset = 0x4, fixed_abs, tag = 'smem constant byte address 0x4 - core index']
  #allocation1 [shape = 'u32[144,128]{1,0:T(1,128)}', space=vmem, size = 0x12000, scoped, tag = 'internal scratch']
  %s0 = inlined_call_operand.hbm [shape: f32[2,8,8], index: 0, kind: input, shape index: {}]
  %s1 = inlined_call_operand.vmem [shape: f32[4], index: 1, kind: input, shape index: {}]
  %s2 = inlined_call_operand.vmem [shape: f32[2], index: 2, kind: input, shape index: {}]
  %s3 = inlined_call_operand.hbm [shape: f32[2,8,8], index: 3, kind: output, shape index: {}]
  %s4 = sld [smem:[#allocation0]]
  $region34: #{tpu_custom_call.1} parent=0
    _
  %s6 = ssub.s32 1, %s4
  %s7 = scalar_select 0, %s6, %s4
  $region1: #{tpu_custom_call.1} parent=0
    #allocation2 [shape = 'u8[8192]{0}', space=vmem, size = 0x2000, scoped, tag = 'input window, operand 0, single buffered']
    #allocation3 [shape = 's32[1]{0}', space=sflag, size = 0x4, scoped, tag = 'scoped memory for tpu_custom_call.1']
    #allocation4 [shape = 's32[1]{0}', space=sflag, size = 0x4, scoped, tag = 'scoped memory for tpu_custom_call.1']
    #allocation5 [shape = 's32[1]{0}', space=sflag, size = 0x4, scoped, tag = 'scoped memory for tpu_custom_call.1']
    #allocation6 [shape = 'u8[512]{0}', space=smem, size = 0x200, scoped, tag = 'input window, operand 1, single buffered']
    #allocation7 [shape = 'u8[512]{0}', space=smem, size = 0x200, scoped, tag = 'input window, operand 2, single buffered']
    #allocation8 [shape = 's32[1]{0}', space=sflag, size = 0x4, scoped, tag = 'scoped memory for tpu_custom_call.1']
    #allocation9 [shape = 'u8[8192]{0}', space=vmem, size = 0x2000, scoped, tag = 'output window, operand 0, single buffered']
    %8 = vsyncpa [#allocation3], 0
    %9 = vsyncpa [#allocation5], 0
    %10 = vsyncpa [#allocation8], 0
    %11 = vsyncpa [#allocation4], 0
    // Predicated region
    $region2: #{tpu_custom_call.1} parent=1 // pred_check
      _
    $region3: #{tpu_custom_call.1} parent=1 // pred_check_branch
      %13 = sbr.rel (0) target = $region5
    $region4: #{tpu_custom_call.1} parent=1 // pred_region
      %s15 = ssub.s32 256, 256
      %16 = vsyncadd [#allocation3], %s15
      %s17 = sshll.u32 [#allocation2], 4
      %s18 = int_to_ptr.vmem [resolvable:$true] %s17
      %23 = dma.hbm_to_vmem [thread:$0]  %s0, 256, %s18, [#allocation3], 128, 128, 8
    $region5: #{tpu_custom_call.1} parent=1 // pred_fallthru
      _
    // Predicated region
    $region6: #{tpu_custom_call.1} parent=1 // pred_check
      _
    $region7: #{tpu_custom_call.1} parent=1 // pred_check_branch
      %25 = sbr.rel (0) target = $region9
    $region8: #{tpu_custom_call.1} parent=1 // pred_region
      %s27 = ssub.s32 16, 16
      %28 = vsyncadd [#allocation5], %s27
      %s30 = sshll.u32 %s1, 4
      %s31 = int_to_ptr.vmem [resolvable:$true] %s30
      %33 = dma.vmem_to_smem %s31, 16, [#allocation6], [#allocation5]
    $region9: #{tpu_custom_call.1} parent=1 // pred_fallthru
      _
    // Predicated region
    $region10: #{tpu_custom_call.1} parent=1 // pred_check
      _
    $region11: #{tpu_custom_call.1} parent=1 // pred_check_branch
      %35 = sbr.rel (0) target = $region13
    $region12: #{tpu_custom_call.1} parent=1 // pred_region
      %s37 = ssub.s32 16, 16
      %38 = vsyncadd [#allocation8], %s37
      %s40 = sshll.u32 %s2, 4
      %s41 = int_to_ptr.vmem [resolvable:$true] %s40
      %43 = dma.vmem_to_smem %s41, 16, [#allocation7], [#allocation8]
    $region13: #{tpu_custom_call.1} parent=1 // pred_fallthru
      _
    // Predicated region
    $region14: #{tpu_custom_call.1} parent=1 // pred_check
      _
    $region15: #{tpu_custom_call.1} parent=1 // pred_check_branch
      %45 = sbr.rel (0) target = $region17
    $region16: #{tpu_custom_call.1} parent=1 // pred_region
      %46 = dma.done [#allocation3], 256
    $region17: #{tpu_custom_call.1} parent=1 // pred_fallthru
      _
    // Predicated region
    $region18: #{tpu_custom_call.1} parent=1 // pred_check
      _
    $region19: #{tpu_custom_call.1} parent=1 // pred_check_branch
      %48 = sbr.rel (0) target = $region21
    $region20: #{tpu_custom_call.1} parent=1 // pred_region
      %49 = dma.done [#allocation5], 16
    $region21: #{tpu_custom_call.1} parent=1 // pred_fallthru
      _
    // Predicated region
    $region22: #{tpu_custom_call.1} parent=1 // pred_check
      _
    $region23: #{tpu_custom_call.1} parent=1 // pred_check_branch
      %51 = sbr.rel (0) target = $region25
    $region24: #{tpu_custom_call.1} parent=1 // pred_region
      %52 = dma.done [#allocation8], 16
    $region25: #{tpu_custom_call.1} parent=1 // pred_fallthru
      _
    %53 = sfence
    %v54 = vld [vmem:[#allocation2] sm:$0xff]
    %s55 = scalar_lea.vmem [#allocation2], 8
    %v56 = vld [vmem:[%s55] sm:$0xff]
    %s57 = sld [smem:[#allocation6]]
    %v58 = vstv %s57
    %v59 = vmul.f32 %v58, %v54
    %s60 = sld [smem:[#allocation6 + $0x1]]
    %v61 = vstv %s60
    %v62 = vmul.f32 %v61, %v56
    %v63 = vadd.f32 %v59, %v62
    %s64 = sld [smem:[#allocation7]]
    %v65 = vstv %s64
    %v66 = vadd.f32 %v63, %v65
    %67 = vxpose.xlu0.b32.start [1/16] %v66, 128
    %68 = vxpose.xlu0.b32.cont [2/16] 0.0, 128
    %69 = vxpose.xlu0.b32.cont [3/16] 0.0, 128
    %70 = vxpose.xlu0.b32.cont [4/16] 0.0, 128
    %71 = vxpose.xlu0.b32.cont [5/16] 0.0, 128
    %72 = vxpose.xlu0.b32.cont [6/16] 0.0, 128
    %73 = vxpose.xlu0.b32.cont [7/16] 0.0, 128
    %74 = vxpose.xlu0.b32.cont [8/16] 0.0, 128
    %75 = vxpose.xlu0.b32.cont [9/16] 0.0, 128
    %76 = vxpose.xlu0.b32.cont [10/16] 0.0, 128
    %77 = vxpose.xlu0.b32.cont [11/16] 0.0, 128
    %78 = vxpose.xlu0.b32.cont [12/16] 0.0, 128
    %79 = vxpose.xlu0.b32.cont [13/16] 0.0, 128
    %80 = vxpose.xlu0.b32.cont [14/16] 0.0, 128
    %81 = vxpose.xlu0.b32.cont [15/16] 0.0, 128
    %82 = vxpose.xlu0.b32.end [16/16] 0.0, 128
    %v83 = vpop.trf.xlu0
    %v84 = vpop.trf.xlu0
    %v85 = vpop.trf.xlu0
    %v86 = vpop.trf.xlu0
    %v87 = vpop.trf.xlu0
    %v88 = vpop.trf.xlu0
    %v89 = vpop.trf.xlu0
    %v90 = vpop.trf.xlu0
    %v91 = vpop.trf.xlu0
    %v92 = vpop.trf.xlu0
    %v93 = vpop.trf.xlu0
    %v94 = vpop.trf.xlu0
    %v95 = vpop.trf.xlu0
    %v96 = vpop.trf.xlu0
    %v97 = vpop.trf.xlu0
    %v98 = vpop.trf.xlu0
    %vm99 = vcmask 64512
    %100 = vst.msk [vmem:[#allocation9] sm:$0xff] %vm99, %v83
    %s101 = sld [smem:[#allocation6 + $0x2]]
    %v102 = vstv %s101
    %v103 = vmul.f32 %v102, %v54
    %s104 = sld [smem:[#allocation6 + $0x3]]
    %v105 = vstv %s104
    %v106 = vmul.f32 %v105, %v56
    %v107 = vadd.f32 %v103, %v106
    %s108 = sld [smem:[#allocation7 + $0x1]]
    %v109 = vstv %s108
    %v110 = vadd.f32 %v107, %v109
    %111 = vxpose.xlu0.b32.start [1/16] %v110, 128
    %112 = vxpose.xlu0.b32.cont [2/16] 0.0, 128
    %113 = vxpose.xlu0.b32.cont [3/16] 0.0, 128
    %114 = vxpose.xlu0.b32.cont [4/16] 0.0, 128
    %115 = vxpose.xlu0.b32.cont [5/16] 0.0, 128
    %116 = vxpose.xlu0.b32.cont [6/16] 0.0, 128
    %117 = vxpose.xlu0.b32.cont [7/16] 0.0, 128
    %118 = vxpose.xlu0.b32.cont [8/16] 0.0, 128
    %119 = vxpose.xlu0.b32.cont [9/16] 0.0, 128
    %120 = vxpose.xlu0.b32.cont [10/16] 0.0, 128
    %121 = vxpose.xlu0.b32.cont [11/16] 0.0, 128
    %122 = vxpose.xlu0.b32.cont [12/16] 0.0, 128
    %123 = vxpose.xlu0.b32.cont [13/16] 0.0, 128
    %124 = vxpose.xlu0.b32.cont [14/16] 0.0, 128
    %125 = vxpose.xlu0.b32.cont [15/16] 0.0, 128
    %126 = vxpose.xlu0.b32.end [16/16] 0.0, 128
    %v127 = vpop.trf.xlu0
    %v128 = vpop.trf.xlu0
    %v129 = vpop.trf.xlu0
    %v130 = vpop.trf.xlu0
    %v131 = vpop.trf.xlu0
    %v132 = vpop.trf.xlu0
    %v133 = vpop.trf.xlu0
    %v134 = vpop.trf.xlu0
    %v135 = vpop.trf.xlu0
    %v136 = vpop.trf.xlu0
    %v137 = vpop.trf.xlu0
    %v138 = vpop.trf.xlu0
    %v139 = vpop.trf.xlu0
    %v140 = vpop.trf.xlu0
    %v141 = vpop.trf.xlu0
    %v142 = vpop.trf.xlu0
    %s143 = scalar_lea.vmem [#allocation9], 8
    %144 = vst.msk [vmem:[%s143] sm:$0xff] %vm99, %v127
    // Predicated region
    $region26: #{tpu_custom_call.1} parent=1 // pred_check
      _
    $region27: #{tpu_custom_call.1} parent=1 // pred_check_branch
      %146 = sbr.rel (0) target = $region29
    $region28: #{tpu_custom_call.1} parent=1 // pred_region
      %s148 = ssub.s32 256, 256
      %149 = vsyncadd [#allocation4], %s148
      %s150 = sshll.u32 [#allocation9], 4
      %s151 = int_to_ptr.vmem [resolvable:$true] %s150
      %156 = dma.vmem_to_hbm [thread:$0]  %s151, 256, %s3, [#allocation4], 128, 128, 8
    $region29: #{tpu_custom_call.1} parent=1 // pred_fallthru
      _
    // Predicated region
    $region30: #{tpu_custom_call.1} parent=1 // pred_check
      _
    $region31: #{tpu_custom_call.1} parent=1 // pred_check_branch
      %158 = sbr.rel (0) target = $region33
    $region32: #{tpu_custom_call.1} parent=1 // pred_region
      %159 = dma.done [#allocation4], 256
    $region33: #{tpu_custom_call.1} parent=1 // pred_fallthru
      _
    %160 = vsyncpa [#allocation3], 1
    %161 = vsyncpa [#allocation4], 1
    %162 = vsyncpa [#allocation5], 1
    %163 = vsyncpa [#allocation8], 1

</llo_original>
